<compile_context>
chip_gen: v5e
topology: v5e:2x2
jax: 0.10.0
libtpu: 0.0.40
codegen_flags: <defaults>
</compile_context>

<pallas_src>
import jax
import jax.numpy as jnp
from jax import lax
from jax.experimental import pallas as pl
from jax.experimental.pallas import tpu as pltpu


def _round_up(x, m):
    return (x + m - 1) // m * m


def _gemm_kernel(x_ref, w_ref, o_ref):
    """One (tm, K) x (K, tn) tile of the conv-as-GEMM.

    Register accumulation (f32 inside the MXU op), single lane-dense bf16 store.
    """
    o_ref[...] = jnp.dot(x_ref[...], w_ref[...],
                         preferred_element_type=jnp.float32).astype(o_ref.dtype)


def depthwise_separable_conv(x_nchw, dw_weight, pw_weight,
                             *, vmem_budget_bytes=24 * 1024 * 1024):
    """Forward pass matching the PyTorch module.

    x_nchw    : (B, Cin, H, W)     float32
    dw_weight : (Cin, 1, 3, 3)     PyTorch depthwise Conv2d weight layout
    pw_weight : (Cout, Cin, 1, 1)  PyTorch pointwise Conv2d weight layout
    returns   : (B, Cout, H, W)
    """
    B, Cin, H, W = x_nchw.shape
    Cout = pw_weight.shape[0]

    M = B * H * W                       # output pixels (GEMM rows)
    K = 9 * Cin                         # fused reduction: 3x3 taps x input channels
    Cout_p = _round_up(Cout, 128)       # lane-dense output channels

    # ---- tile selection with double-buffer-aware VMEM accounting ----
    tn = 256 if (Cout_p % 256 == 0) else 128
    tn = min(tn, Cout_p)
    grid_n = Cout_p // tn

    def _vmem_footprint(tm_, tn_):
        x_blk = tm_ * _round_up(K, 128) * 2        # bf16 input tile  (last dim pads to 128)
        w_blk = _round_up(K, 16) * tn_ * 2         # bf16 weight tile (sublane pads to 16)
        o_blk = tm_ * tn_ * 2                      # bf16 output tile
        return 2 * (x_blk + w_blk + o_blk)         # x2: BlockSpec double-buffering

    tm = 128
    M_p = _round_up(M, tm)
    # Grow the row tile while keeping >= 4 grid steps (pipelining + v7x megacore)
    # and staying inside the (double-buffered) VMEM budget.
    while (tm < 2048 and M_p % (2 * tm) == 0
           and (M_p // (2 * tm)) * grid_n >= 4
           and _vmem_footprint(2 * tm, tn) <= vmem_budget_bytes):
        tm *= 2
    grid_m = M_p // tm

    vmem_limit = min(max(2 * _vmem_footprint(tm, tn), 16 * 1024 * 1024),
                     48 * 1024 * 1024)

    # ---- layout / weight prep (plain JAX glue at the PyTorch boundary) ----
    # TODO(synk): for large images the wrapper-side im2col costs a 9x-expanded HBM pass;
    # move the tap concatenation into the kernel with halo'd H tiles if that dominates.
    x_nhwc = jnp.transpose(x_nchw, (0, 2, 3, 1)).astype(jnp.bfloat16)     # (B,H,W,Cin)
    x_pad = jnp.pad(x_nhwc, ((0, 0), (1, 1), (1, 1), (0, 0)))             # (B,H+2,W+2,Cin)
    taps = [x_pad[:, ki:ki + H, kj:kj + W, :]
            for ki in range(3) for kj in range(3)]                        # 9 x (B,H,W,Cin)
    x_cols = jnp.concatenate(taps, axis=-1).reshape(M, K)                 # (M, 9*Cin) bf16
    if M_p != M:
        x_cols = jnp.pad(x_cols, ((0, M_p - M), (0, 0)))

    # Fused weight: W[(ki*3+kj)*Cin + ci, co] = dw[ci,ki,kj] * pw[co,ci]
    # TODO(synk): on v5e with large Cout this fusion inflates MXU MACs ~9x; un-fuse
    # (VPU depthwise + K=Cin pointwise GEMM) there if the kernel goes compute-bound.
    dw = jnp.transpose(dw_weight[:, 0, :, :], (1, 2, 0))                  # (3,3,Cin)
    pw = jnp.transpose(pw_weight[:, :, 0, 0], (1, 0))                     # (Cin,Cout)
    w_fused = (dw[:, :, :, None] * pw[None, None, :, :]).reshape(K, Cout)
    w_fused = jnp.pad(w_fused, ((0, 0), (0, Cout_p - Cout))).astype(jnp.bfloat16)

    # ---- fused conv-as-GEMM kernel ----
    out_gemm = pl.pallas_call(
        _gemm_kernel,
        out_shape=jax.ShapeDtypeStruct((M_p, Cout_p), jnp.bfloat16),
        grid_spec=pltpu.PrefetchScalarGridSpec(
            num_scalar_prefetch=0,
            grid=(grid_m, grid_n),
            in_specs=[
                pl.BlockSpec((tm, K), lambda i, j: (i, 0)),   # rows tile, full K
                pl.BlockSpec((K, tn), lambda i, j: (0, j)),   # full K, Cout tile
            ],
            out_specs=pl.BlockSpec((tm, tn), lambda i, j: (i, j)),
        ),
        compiler_params=pltpu.CompilerParams(
            dimension_semantics=("parallel", "parallel"),
            vmem_limit_bytes=vmem_limit,
        ),
    )(x_cols, w_fused)

    out = out_gemm[:M, :Cout].astype(x_nchw.dtype)                        # drop pads, bf16->f32
    out = out.reshape(B, H, W, Cout)
    return jnp.transpose(out, (0, 3, 1, 2))                               # back to NCHW


def _reference(x_nchw, dw_weight, pw_weight):
    """Pure-JAX f32 reference (lax.conv) for correctness checking."""
    Cin = x_nchw.shape[1]
    dn = lax.conv_dimension_numbers(x_nchw.shape, dw_weight.shape,
                                    ("NCHW", "OIHW", "NCHW"))
    y = lax.conv_general_dilated(x_nchw, dw_weight, (1, 1),
                                 ((1, 1), (1, 1)),
                                 dimension_numbers=dn,
                                 feature_group_count=Cin)
    dn2 = lax.conv_dimension_numbers(y.shape, pw_weight.shape,
                                     ("NCHW", "OIHW", "NCHW"))
    return lax.conv_general_dilated(y, pw_weight, (1, 1), ((0, 0), (0, 0)),
                                    dimension_numbers=dn2)


if __name__ == "__main__":
    B, Cin, Cout, H, W = 2, 4, 8, 16, 16

    key = jax.random.PRNGKey(0)
    kx, kdw, kpw = jax.random.split(key, 3)
    x = jax.random.normal(kx, (B, Cin, H, W), dtype=jnp.float32)
    dw_weight = jax.random.normal(kdw, (Cin, 1, 3, 3), dtype=jnp.float32) * 0.1
    pw_weight = jax.random.normal(kpw, (Cout, Cin, 1, 1), dtype=jnp.float32) * 0.1

    out = depthwise_separable_conv(x, dw_weight, pw_weight)
    out = jax.block_until_ready(out)

    ref = _reference(x, dw_weight, pw_weight)
    assert out.shape == (B, Cout, H, W)
    # bf16 MXU operands + bf16 output store with f32 accumulation -> loosened tolerance.
    assert jnp.allclose(out, ref, atol=2e-2, rtol=2e-2)

    print("KERNEL_OK")
</pallas_src>

<mosaic_0001>
module attributes {stable_mosaic.version = 11 : i64} {
  func.func @_gemm_kernel(%arg0: i32, %arg1: i32, %arg2: memref<128x36xbf16, #tpu.memory_space<vmem>>, %arg3: memref<36x128xbf16, #tpu.memory_space<vmem>>, %arg4: memref<128x128xbf16, #tpu.memory_space<vmem>>) attributes {dimension_semantics = [#tpu.dimension_semantics<parallel>, #tpu.dimension_semantics<parallel>], iteration_bounds = array<i64: 4, 1>, scalar_prefetch = 0 : i64, scratch_operands = 0 : i64, tpu.core_type = #tpu.core_type<tc>, window_params = [{transform_indices = @transform_0, window_bounds = array<i64: 128, 36>}, {transform_indices = @transform_1, window_bounds = array<i64: 36, 128>}, {transform_indices = @transform_2, window_bounds = array<i64: 128, 128>}]} {
    %c0 = arith.constant 0 : index
    %c0_0 = arith.constant 0 : index
    %0 = vector.load %arg2[%c0, %c0_0] : memref<128x36xbf16, #tpu.memory_space<vmem>>, vector<128x36xbf16>
    %c0_1 = arith.constant 0 : index
    %c0_2 = arith.constant 0 : index
    %1 = vector.load %arg3[%c0_1, %c0_2] : memref<36x128xbf16, #tpu.memory_space<vmem>>, vector<36x128xbf16>
    %cst = arith.constant dense<0.000000e+00> : vector<128x128xf32>
    %2 = tpu.matmul %0, %1, %cst {dimension_numbers = #tpu.dot_dimension_numbers<[1], [0], [0], [1], [0, 0, 1, 1], [], []>} : vector<128x36xbf16>, vector<36x128xbf16>, vector<128x128xf32> -> vector<128x128xf32>
    %3 = arith.truncf %2 : vector<128x128xf32> to vector<128x128xbf16>
    %c0_3 = arith.constant 0 : index
    %c0_4 = arith.constant 0 : index
    %4 = vector.load %arg4[%c0_3, %c0_4] : memref<128x128xbf16, #tpu.memory_space<vmem>>, vector<128x128xbf16>
    tpu.vector_store %arg4[%c0_3, %c0_4], %3 {strides = array<i32>} : memref<128x128xbf16, #tpu.memory_space<vmem>>, vector<128x128xbf16>,
    return
  }
  func.func @transform_0(%arg0: i32, %arg1: i32) -> (i32, i32) {
    %c0_i32 = arith.constant 0 : i32
    %c0_i32_0 = arith.constant 0 : i32
    return %arg0, %c0_i32 : i32, i32
  }
  func.func @transform_1(%arg0: i32, %arg1: i32) -> (i32, i32) {
    %c0_i32 = arith.constant 0 : i32
    %c0_i32_0 = arith.constant 0 : i32
    return %c0_i32, %arg1 : i32, i32
  }
  func.func @transform_2(%arg0: i32, %arg1: i32) -> (i32, i32) {
    %c0_i32 = arith.constant 0 : i32
    return %arg0, %arg1 : i32, i32
  }
}

</mosaic_0001>

<llo_original>
// kernel: tpu_custom_call.1
$region0: #{tpu_custom_call.1}
  #allocation0 [shape = 'u32[]', space=smem, size = 0x4, offset = 0x4, fixed_abs, tag = 'smem constant byte address 0x4 - core index']
  #allocation1 [shape = 'u32[72,128]{1,0:T(1,128)}', space=vmem, size = 0x9000, scoped, tag = 'internal scratch']
  %s0 = inlined_call_operand.vmem [shape: bf16[512,36], index: 0, kind: input, shape index: {}]
  %s1 = inlined_call_operand.vmem [shape: bf16[36,128], index: 1, kind: input, shape index: {}]
  %s2 = inlined_call_operand.hbm [shape: bf16[512,128], index: 2, kind: output, shape index: {}]
  %s3 = sld [smem:[#allocation0]]
  $region41: #{tpu_custom_call.1} parent=0
    _
  %s5 = ssub.s32 1, %s3
  %s6 = scalar_select 0, %s5, %s3
  $region1: #{tpu_custom_call.1} parent=0
    #allocation2 [shape = 'u8[65536]{0}', space=vmem, size = 0x10000, scoped, tag = 'output window, operand 0']
    #allocation3 [shape = 's32[2]{0}', space=sflag, size = 0x8, scoped, tag = 'scoped memory for tpu_custom_call.1']
    %7 = vsyncpa [#allocation3], 0
    %s8 = scalar_lea.sflag [#allocation3], 1
    %9 = vsyncpa %s8, 0
    loop: start=0, step=1, limit=6
    $region2: #{tpu_custom_call.1} parent=1 // loop_pre_header
      _
    $region3: #{tpu_custom_call.1} parent=1 // loop_header
      %s11 = sphi 0, %s15
      %p12 = scmp.ge.s32.totalorder %s11, 6
      %s18 = sphi 0, %s30
      %s19 = sphi 0, %s26
      %s20 = sphi 0, %s18
      %s21 = sphi 0, %s19
      %s22 = sphi 0, %s20
      %s23 = sphi 0, %s21
      %s33 = sphi 0, %s35
      %s36 = sphi 0, %s33
      %s37 = sphi 0, %s36
      %s53 = sphi 0, %s37
      %s59 = sphi 0, %s61
      %s62 = sphi 0, %s59
      %s63 = sphi 0, %s62
      %s79 = sphi 0, %s63
      %s87 = sphi 0, %s89
      %s90 = sphi 0, %s87
      %s91 = sphi 0, %s90
      %s107 = sphi 0, %s91
    $region4: #{tpu_custom_call.1} parent=1 // loop_header_branch
      %14 = sbr.rel (%p12) target = $region8
    $region5: #{tpu_custom_call.1} parent=1 // loop_body
      %s16 = ssub.s32 %s11, 1
      %s17 = ssub.s32 %s11, 2
      %s24 = sadd.s32 1, %s19
      %p25 = scmp.ge.s32.totalorder %s24, 1
      %s26 = scalar_select %p25, 0, %s24
      %s27 = sadd.s32 1, %s18
      %s28 = scalar_select %p25, %s27, %s18
      %p29 = scmp.ge.s32.totalorder %s28, 4
      %s30 = scalar_select %p29, 0, %s28
      %s31 = ssub.s32 %s18, %s30
      %p32 = scmp.eq.s32.totalorder %s31, 0
      %s34 = sadd.s32 %s33, 1
      %s35 = scalar_select %p32, %s33, %s34
      %p38 = pneg %p32
      %p39 = scmp.eq.s32.totalorder %s11, 3
      %p40 = por %p38, %p39
      %p41 = scmp.ne.s32.totalorder %s33, %s36
      %p42 = scmp.eq.s32.totalorder %s11, 0
      %p43 = por %p41, %p42
      %p44 = scmp.ne.s32.totalorder %s33, %s36
      %p45 = scmp.eq.s32.totalorder %s16, 3
      %p46 = por %p44, %p45
      %p47 = scmp.ne.s32.totalorder %s36, %s37
      %p48 = scmp.eq.s32.totalorder %s16, 0
      %p49 = por %p47, %p48
      %p50 = scmp.ne.s32.totalorder %s36, %s37
      %p51 = scmp.eq.s32.totalorder %s17, 3
      %p52 = por %p50, %p51
      %p54 = scmp.ne.s32.totalorder %s37, %s53
      %p55 = scmp.eq.s32.totalorder %s17, 0
      %p56 = por %p54, %p55
      %s57 = ssub.s32 %s19, %s26
      %p58 = scmp.eq.s32.totalorder %s57, 0
      %s60 = sadd.s32 %s59, 1
      %s61 = scalar_select %p58, %s59, %s60
      %p64 = pneg %p58
      %p65 = scmp.eq.s32.totalorder %s11, 3
      %p66 = por %p64, %p65
      %p67 = scmp.ne.s32.totalorder %s59, %s62
      %p68 = scmp.eq.s32.totalorder %s11, 0
      %p69 = por %p67, %p68
      %p70 = scmp.ne.s32.totalorder %s59, %s62
      %p71 = scmp.eq.s32.totalorder %s16, 3
      %p72 = por %p70, %p71
      %p73 = scmp.ne.s32.totalorder %s62, %s63
      %p74 = scmp.eq.s32.totalorder %s16, 0
      %p75 = por %p73, %p74
      %p76 = scmp.ne.s32.totalorder %s62, %s63
      %p77 = scmp.eq.s32.totalorder %s17, 3
      %p78 = por %p76, %p77
      %p80 = scmp.ne.s32.totalorder %s63, %s79
      %p81 = scmp.eq.s32.totalorder %s17, 0
      %p82 = por %p80, %p81
      %s83 = ssub.s32 %s18, %s30
      %s84 = ssub.s32 %s19, %s26
      %s85 = sor.u32 %s83, %s84
      %p86 = scmp.eq.s32.totalorder %s85, 0
      %s88 = sadd.s32 %s87, 1
      %s89 = scalar_select %p86, %s87, %s88
      %p92 = pneg %p86
      %p93 = scmp.eq.s32.totalorder %s11, 3
      %p94 = por %p92, %p93
      %p95 = scmp.ne.s32.totalorder %s87, %s90
      %p96 = scmp.eq.s32.totalorder %s11, 0
      %p97 = por %p95, %p96
      %p98 = scmp.ne.s32.totalorder %s87, %s90
      %p99 = scmp.eq.s32.totalorder %s16, 3
      %p100 = por %p98, %p99
      %p101 = scmp.ne.s32.totalorder %s90, %s91
      %p102 = scmp.eq.s32.totalorder %s16, 0
      %p103 = por %p101, %p102
      %p104 = scmp.ne.s32.totalorder %s90, %s91
      %p105 = scmp.eq.s32.totalorder %s17, 3
      %p106 = por %p104, %p105
      %p108 = scmp.ne.s32.totalorder %s91, %s107
      %p109 = scmp.eq.s32.totalorder %s17, 0
      %p110 = por %p108, %p109
      %p111 = scmp.le.s32.totalorder 1, %s11
      %p112 = scmp.lt.s32.totalorder %s11, 5
      %p113 = pnand %p111, %p112
      %p114 = pneg %p113
      // Predicated region
      $region9: #{tpu_custom_call.1} parent=5 // pred_check
        _
      $region10: #{tpu_custom_call.1} parent=5 // pred_check_branch
        %116 = sbr.rel (%p113) target = $region12
      $region11: #{tpu_custom_call.1} parent=5 // pred_region
        %s117 = ssub.s32 %s11, 1
        // Predicated region
        $region13: #{tpu_custom_call.1} parent=11 // pred_check
          %p118 = pneg %p75
        $region14: #{tpu_custom_call.1} parent=11 // pred_check_branch
          %120 = sbr.rel (%p118) target = $region16
        $region15: #{tpu_custom_call.1} parent=11 // pred_region
          %p121 = scmp.lt.s32.totalorder %s21, 0
          %s122 = scalar_select %p121, %s21, 0
          %s123 = smul.addr %s122, 4
          %s124 = scalar_lea.vmem %s1, %s123
        $region16: #{tpu_custom_call.1} parent=11 // pred_fallthru
          _
      $region12: #{tpu_custom_call.1} parent=5 // pred_fallthru
        _
      %p125 = scmp.lt.s32.totalorder %s11, 4
      // Predicated region
      $region17: #{tpu_custom_call.1} parent=5 // pred_check
        %p126 = pneg %p125
      $region18: #{tpu_custom_call.1} parent=5 // pred_check_branch
        %128 = sbr.rel (%p126) target = $region20
      $region19: #{tpu_custom_call.1} parent=5 // pred_region
        // Predicated region
        $region21: #{tpu_custom_call.1} parent=19 // pred_check
          %p129 = pneg %p43
        $region22: #{tpu_custom_call.1} parent=19 // pred_check_branch
          %131 = sbr.rel (%p129) target = $region24
        $region23: #{tpu_custom_call.1} parent=19 // pred_region
          %s132 = smul.u32 16, %s18
          %p133 = scmp.lt.s32.totalorder %s132, 63
          %s134 = scalar_select %p133, %s132, 63
          %s135 = smul.addr %s134, 4
          %s136 = scalar_lea.vmem %s0, %s135
          %s137 = smul.u32 16, %s18
        $region24: #{tpu_custom_call.1} parent=19 // pred_fallthru
          _
      $region20: #{tpu_custom_call.1} parent=5 // pred_fallthru
        _
      %p138 = scmp.le.s32.totalorder 1, %s11
      %p139 = scmp.lt.s32.totalorder %s11, 5
      %p140 = pnand %p138, %p139
      %p141 = pneg %p140
      // Predicated region
      $region25: #{tpu_custom_call.1} parent=5 // pred_check
        _
      $region26: #{tpu_custom_call.1} parent=5 // pred_check_branch
        %143 = sbr.rel (%p140) target = $region28
      $region27: #{tpu_custom_call.1} parent=5 // pred_region
        %s144 = ssub.s32 %s11, 1
        %s145 = smul.u32 16, %s20
        %p146 = scmp.lt.s32.totalorder %s145, 63
        %s147 = scalar_select %p146, %s145, 63
        %s148 = smul.addr %s147, 4
        %s149 = scalar_lea.vmem %s0, %s148
        %p150 = pneg %p49
        %p151 = pneg %p46
        %p152 = scmp.lt.s32.totalorder %s21, 0
        %s153 = scalar_select %p152, %s21, 0
        %s154 = smul.addr %s153, 4
        %s155 = scalar_lea.vmem %s1, %s154
        %p156 = pneg %p75
        %p157 = pneg %p72
        %p158 = pneg %p103
        %p159 = pneg %p100
        %s160 = sand.u32 %s90, 1
        %s161 = scalar_lea.sflag [#allocation3], %s160
        %s162 = sand.u32 %s90, 1
        %s163 = smul.addr %s162, 64
        %s164 = scalar_lea.vmem [#allocation2], %s163
        %s165 = smul.u32 16, %s20
        %p166 = scmp.lt.s32.totalorder %s165, 63
        %s167 = scalar_select %p166, %s165, 63
        %s168 = smul.addr %s167, 4
        %s169 = scalar_lea.vmem %s0, %s168
        %s170 = smul.u32 16, %s20
        %p171 = scmp.lt.s32.totalorder %s21, 0
        %s172 = scalar_select %p171, %s21, 0
        %s173 = smul.addr %s172, 4
        %s174 = scalar_lea.vmem %s1, %s173
        %s175 = smul.u32 16, %s20
        %v177 = vld [vmem:[%s169] sm:$0xf]
        %v178 = vld [vmem:[%s169 + $0x4] sm:$0xf]
        %v179 = vld [vmem:[%s169 + $0x8] sm:$0xf]
        %v180 = vld [vmem:[%s169 + $0xc] sm:$0xf]
        %v181 = vld [vmem:[%s169 + $0x10] sm:$0xf]
        %v182 = vld [vmem:[%s169 + $0x14] sm:$0xf]
        %v183 = vld [vmem:[%s169 + $0x18] sm:$0xf]
        %v184 = vld [vmem:[%s169 + $0x1c] sm:$0xf]
        %v185 = vld [vmem:[%s169 + $0x20] sm:$0xf]
        %v186 = vld [vmem:[%s169 + $0x24] sm:$0xf]
        %v187 = vld [vmem:[%s169 + $0x28] sm:$0xf]
        %v188 = vld [vmem:[%s169 + $0x2c] sm:$0xf]
        %v189 = vld [vmem:[%s169 + $0x30] sm:$0xf]
        %v190 = vld [vmem:[%s169 + $0x34] sm:$0xf]
        %v191 = vld [vmem:[%s169 + $0x38] sm:$0xf]
        %v192 = vld [vmem:[%s169 + $0x3c] sm:$0xf]
        %v193 = vld [vmem:[%s174] sm:$0xf]
        %v194 = vld [vmem:[%s174 + $0x4] sm:$0xf]
        %v195 = vld [vmem:[%s174 + $0x8] sm:$0xf]
        %v196 = vld [vmem:[%s174 + $0xc] sm:$0xf]
        %v197 = vld [vmem:[%s174 + $0x10] sm:$0x3]
        %v214 = vunpack.c.l.b16 %v177
        %v215 = vunpack.c.l.b16 %v178
        %v216 = vunpack.c.l.b16 %v179
        %v217 = vunpack.c.l.b16 %v180
        %v218 = vunpack.c.l.b16 %v181
        %v219 = vunpack.c.l.b16 %v182
        %v220 = vunpack.c.l.b16 %v183
        %v221 = vunpack.c.l.b16 %v184
        %v222 = vunpack.c.l.b16 %v185
        %v223 = vunpack.c.l.b16 %v186
        %v224 = vunpack.c.l.b16 %v187
        %v225 = vunpack.c.l.b16 %v188
        %v226 = vunpack.c.l.b16 %v189
        %v227 = vunpack.c.l.b16 %v190
        %v228 = vunpack.c.l.b16 %v191
        %v229 = vunpack.c.l.b16 %v192
        %v230 = vpack.c.b16 %v215, %v214
        %v231 = vpack.c.b16 %v217, %v216
        %v232 = vpack.c.b16 %v219, %v218
        %v233 = vpack.c.b16 %v221, %v220
        %v234 = vpack.c.b16 %v223, %v222
        %v235 = vpack.c.b16 %v225, %v224
        %v236 = vpack.c.b16 %v227, %v226
        %v237 = vpack.c.b16 %v229, %v228
        %v243 = vunpack.c.l.b16 %v193
        %v244 = vunpack.c.l.b16 %v194
        %v245 = vunpack.c.l.b16 %v195
        %v246 = vunpack.c.l.b16 %v196
        %v247 = vunpack.c.l.b16 %v197
        %v248 = vpack.c.b16 %v244, %v243
        %v249 = vpack.c.b16 %v246, %v245
        %v250 = vpack.c.b16 %v247, %v247
        %vm253 = vcmask 293888
        %v255 = vsel %vm253, %v230, 0
        %v258 = vsel %vm253, %v231, 0
        %v261 = vsel %vm253, %v232, 0
        %v264 = vsel %vm253, %v233, 0
        %v267 = vsel %vm253, %v234, 0
        %v270 = vsel %vm253, %v235, 0
        %v273 = vsel %vm253, %v236, 0
        %v276 = vsel %vm253, %v237, 0
        %vm278 = vcmask 1041408
        %v280 = vsel %vm278, %v250, 0
        %282 = vmatpush.bf16.msra.mxu0 0
        %283 = vmatpush.bf16.msra.mxu0 0
        %284 = vmatpush.bf16.msra.mxu0 0
        %285 = vmatpush.bf16.msra.mxu0 0
        %286 = vmatpush.bf16.msra.mxu0 0
        %287 = vmatpush.bf16.msra.mxu0 %v280
        %288 = vmatpush.bf16.msra.mxu0 %v249
        %289 = vmatpush.bf16.msra.mxu0 %v248
        %290 = vmatmul.bf16.gmra.mxu0 %v255
        %v291 = vpop.f32.mrf.mxu0
        %v292 = vadd.f32 0.0, %v291
        %v293 = vpop.f32.mrf.mxu0
        %v294 = vadd.f32 0.0, %v293
        %295 = vmatmul.bf16.gmra.mxu0 %v258
        %v296 = vpop.f32.mrf.mxu0
        %v297 = vadd.f32 0.0, %v296
        %v298 = vpop.f32.mrf.mxu0
        %v299 = vadd.f32 0.0, %v298
        %300 = vmatmul.bf16.gmra.mxu0 %v261
        %v301 = vpop.f32.mrf.mxu0
        %v302 = vadd.f32 0.0, %v301
        %v303 = vpop.f32.mrf.mxu0
        %v304 = vadd.f32 0.0, %v303
        %305 = vmatmul.bf16.gmra.mxu0 %v264
        %v306 = vpop.f32.mrf.mxu0
        %v307 = vadd.f32 0.0, %v306
        %v308 = vpop.f32.mrf.mxu0
        %v309 = vadd.f32 0.0, %v308
        %310 = vmatmul.bf16.gmra.mxu0 %v267
        %v311 = vpop.f32.mrf.mxu0
        %v312 = vadd.f32 0.0, %v311
        %v313 = vpop.f32.mrf.mxu0
        %v314 = vadd.f32 0.0, %v313
        %315 = vmatmul.bf16.gmra.mxu0 %v270
        %v316 = vpop.f32.mrf.mxu0
        %v317 = vadd.f32 0.0, %v316
        %v318 = vpop.f32.mrf.mxu0
        %v319 = vadd.f32 0.0, %v318
        %320 = vmatmul.bf16.gmra.mxu0 %v273
        %v321 = vpop.f32.mrf.mxu0
        %v322 = vadd.f32 0.0, %v321
        %v323 = vpop.f32.mrf.mxu0
        %v324 = vadd.f32 0.0, %v323
        %325 = vmatmul.bf16.gmra.mxu0 %v276
        %v326 = vpop.f32.mrf.mxu0
        %v327 = vadd.f32 0.0, %v326
        %v328 = vpop.f32.mrf.mxu0
        %v329 = vadd.f32 0.0, %v328
        %330 = vdwg.mxu0
        %v331 = vpack.c.bf16 %v292, %v292
        %v332 = vpack.c.bf16 %v294, %v294
        %v333 = vpack.c.bf16 %v297, %v297
        %v334 = vpack.c.bf16 %v299, %v299
        %v335 = vpack.c.bf16 %v302, %v302
        %v336 = vpack.c.bf16 %v304, %v304
        %v337 = vpack.c.bf16 %v307, %v307
        %v338 = vpack.c.bf16 %v309, %v309
        %v339 = vpack.c.bf16 %v312, %v312
        %v340 = vpack.c.bf16 %v314, %v314
        %v341 = vpack.c.bf16 %v317, %v317
        %v342 = vpack.c.bf16 %v319, %v319
        %v343 = vpack.c.bf16 %v322, %v322
        %v344 = vpack.c.bf16 %v324, %v324
        %v345 = vpack.c.bf16 %v327, %v327
        %v346 = vpack.c.bf16 %v329, %v329
        %347 = vst [vmem:[%s164] sm:$0xf] %v331
        %348 = vst [vmem:[%s164 + $0x4] sm:$0xf] %v332
        %349 = vst [vmem:[%s164 + $0x8] sm:$0xf] %v333
        %350 = vst [vmem:[%s164 + $0xc] sm:$0xf] %v334
        %351 = vst [vmem:[%s164 + $0x10] sm:$0xf] %v335
        %352 = vst [vmem:[%s164 + $0x14] sm:$0xf] %v336
        %353 = vst [vmem:[%s164 + $0x18] sm:$0xf] %v337
        %354 = vst [vmem:[%s164 + $0x1c] sm:$0xf] %v338
        %355 = vst [vmem:[%s164 + $0x20] sm:$0xf] %v339
        %356 = vst [vmem:[%s164 + $0x24] sm:$0xf] %v340
        %357 = vst [vmem:[%s164 + $0x28] sm:$0xf] %v341
        %358 = vst [vmem:[%s164 + $0x2c] sm:$0xf] %v342
        %359 = vst [vmem:[%s164 + $0x30] sm:$0xf] %v343
        %360 = vst [vmem:[%s164 + $0x34] sm:$0xf] %v344
        %361 = vst [vmem:[%s164 + $0x38] sm:$0xf] %v345
        %362 = vst [vmem:[%s164 + $0x3c] sm:$0xf] %v346
        %s363 = sand.u32 %s90, 1
        %s364 = scalar_lea.sflag [#allocation3], %s363
        %s365 = sand.u32 %s90, 1
        %s366 = smul.addr %s365, 64
        %s367 = scalar_lea.vmem [#allocation2], %s366
        // Predicated region
        $region29: #{tpu_custom_call.1} parent=27 // pred_check
          %p368 = pneg %p100
        $region30: #{tpu_custom_call.1} parent=27 // pred_check_branch
          %370 = sbr.rel (%p368) target = $region32
        $region31: #{tpu_custom_call.1} parent=27 // pred_region
          %s371 = smul.u32 16, %s20
          %373 = vsyncadd %s364, 0
          %s374 = sadd.s32 %s21, %s371
          %s375 = smul.addr %s374, 4
          %s376 = scalar_lea.hbm %s2, %s375
          %s377 = sshll.u32 %s367, 4
          %s378 = int_to_ptr.vmem [resolvable:$true] %s377
          %s379 = sshll.u32 %s376, 4
          %s380 = int_to_ptr.hbm [resolvable:$true] %s379
          %385 = dma.vmem_to_hbm [thread:$0]  %s378, 1024, %s380, %s364, 64, 64, 4
        $region32: #{tpu_custom_call.1} parent=27 // pred_fallthru
          _
      $region28: #{tpu_custom_call.1} parent=5 // pred_fallthru
        _
      %p386 = scmp.le.s32.totalorder 2, %s11
      // Predicated region
      $region33: #{tpu_custom_call.1} parent=5 // pred_check
        %p387 = pneg %p386
      $region34: #{tpu_custom_call.1} parent=5 // pred_check_branch
        %389 = sbr.rel (%p387) target = $region36
      $region35: #{tpu_custom_call.1} parent=5 // pred_region
        %s390 = ssub.s32 %s11, 2
        // Predicated region
        $region37: #{tpu_custom_call.1} parent=35 // pred_check
          %p391 = pneg %p106
        $region38: #{tpu_custom_call.1} parent=35 // pred_check_branch
          %393 = sbr.rel (%p391) target = $region40
        $region39: #{tpu_custom_call.1} parent=35 // pred_region
          %s394 = sand.u32 %s91, 1
          %s395 = scalar_lea.sflag [#allocation3], %s394
          %s396 = sand.u32 %s91, 1
          %s397 = smul.addr %s396, 64
          %s398 = scalar_lea.vmem [#allocation2], %s397
          %400 = dma.done %s395, 1024
        $region40: #{tpu_custom_call.1} parent=35 // pred_fallthru
          _
      $region36: #{tpu_custom_call.1} parent=5 // pred_fallthru
        _
    $region6: #{tpu_custom_call.1} parent=1 // loop_footer
      %s15 = sadd.s32 1, %s11
    $region7: #{tpu_custom_call.1} parent=1 // loop_footer_branch
      %10 = sbr.rel target = $region3
    $region8: #{tpu_custom_call.1} parent=1 // loop_exit
      _
    %401 = vsyncpa [#allocation3], 1
    %s402 = scalar_lea.sflag [#allocation3], 1
    %403 = vsyncpa %s402, 1

</llo_original>
